<compile_context>
chip_gen: v5e
topology: v5e:2x2
jax: 0.10.0
libtpu: 0.0.40
codegen_flags: <defaults>
</compile_context>

<pallas_src>
import functools

import numpy as np
import jax
import jax.numpy as jnp
from jax.experimental import pallas as pl
from jax.experimental.pallas import tpu as pltpu


# ----------------------------------------------------------------------------
# In-kernel helpers
# ----------------------------------------------------------------------------
_INV_SQRT2 = 0.7071067811865476


def _erf_poly(x):
    # Abramowitz & Stegun 7.1.26, max abs err ~1.5e-7 (fp32-accurate).
    a1, a2, a3, a4, a5 = (0.254829592, -0.284496736, 1.421413741,
                          -1.453152027, 1.061405429)
    pp = 0.3275911
    ax = jnp.abs(x)
    t = 1.0 / (1.0 + pp * ax)
    poly = ((((a5 * t + a4) * t + a3) * t + a2) * t + a1) * t
    y = 1.0 - poly * jnp.exp(-ax * ax)
    return jnp.where(x >= 0, y, -y)


def _gelu_exact(x):
    # TODO(synk): exact-erf GELU reproduced via an fp32-accurate polynomial so
    # the kernel never relies on an in-Mosaic erf lowering.
    return 0.5 * x * (1.0 + _erf_poly(x * _INV_SQRT2))


# ----------------------------------------------------------------------------
# Pallas kernels
# ----------------------------------------------------------------------------
def _embed_kernel(xp_ref, w_ref, pe_ref, o_ref):
    # Token Conv1d (k=3, circular pad done in wrapper, no bias) + positional
    # encoding fused in.  xp: (1, T+2, Cin)  w: (3, Cin, D) bf16  pe: (T, D)
    T = o_ref.shape[1]
    acc = pe_ref[...].astype(jnp.float32)
    for kk in range(3):
        tap = xp_ref[0, pl.ds(kk, T), :].astype(jnp.bfloat16)
        acc = acc + jnp.dot(tap, w_ref[kk], preferred_element_type=jnp.float32)
    o_ref[0] = acc


def _make_fused_conv_kernel(ks, Wp, p):
    """Fused (same-pad conv) -> GELU -> (same-pad conv) on one batch element.

    The padded NHWC activation arrives flattened as (S, Cin) with
    S = (H+2p)*(W+2p); tap (di, dj) is the contiguous slab starting at
    di*Wp + dj of length Q = (H-1)*Wp + W ("wide output" trick).  The d_ff
    intermediate stays in a VMEM scratch; its pad positions are re-zeroed via
    a precomputed lane mask before the second conv.
    """
    q0 = p * Wp + p

    def kernel(x_ref, w1_ref, b1_ref, w2_ref, b2_ref, mask_ref, o_ref, mid_ref):
        Q = o_ref.shape[1]
        F = mid_ref.shape[1]
        Nout = o_ref.shape[2]

        # ---- conv1 (taps accumulate into an f32 value kept in VMEM/vregs)
        acc = jnp.zeros((Q, F), jnp.float32) + b1_ref[...]
        t = 0
        for di in range(ks):
            for dj in range(ks):
                s = di * Wp + dj
                tap = x_ref[0, pl.ds(s, Q), :].astype(jnp.bfloat16)
                acc = acc + jnp.dot(tap, w1_ref[t],
                                    preferred_element_type=jnp.float32)
                t += 1

        # ---- GELU + zero out pad/garbage positions before conv2
        g = _gelu_exact(acc) * mask_ref[...]

        # ---- stage intermediate (padded layout) in VMEM scratch
        mid_ref[...] = jnp.zeros(mid_ref.shape, mid_ref.dtype)
        mid_ref[pl.ds(q0, Q), :] = g.astype(jnp.bfloat16)

        # ---- conv2
        acc2 = jnp.zeros((Q, Nout), jnp.float32) + b2_ref[...]
        t = 0
        for di in range(ks):
            for dj in range(ks):
                s = di * Wp + dj
                acc2 = acc2 + jnp.dot(mid_ref[pl.ds(s, Q), :], w2_ref[t],
                                      preferred_element_type=jnp.float32)
                t += 1
        o_ref[0] = acc2

    return kernel


def _make_wsum_ln_kernel(k):
    """Softmax-weighted sum over k period branches + residual + LayerNorm."""
    def kernel(*refs):
        x_ref = refs[0]
        r_refs = refs[1:1 + k]
        pw_ref, g_ref, b_ref, o_ref = refs[1 + k], refs[2 + k], refs[3 + k], refs[4 + k]
        y = x_ref[...]
        for i in range(k):
            y = y + pw_ref[:, i:i + 1] * r_refs[i][...]
        mu = jnp.mean(y, axis=-1, keepdims=True)
        var = jnp.mean((y - mu) ** 2, axis=-1, keepdims=True)
        o_ref[...] = (y - mu) * jax.lax.rsqrt(var + 1e-5) * g_ref[...] + b_ref[...]
    return kernel


def _proj_denorm_kernel(x_ref, w_ref, b_ref, s_ref, m_ref, o_ref):
    # Final Linear projection with the de-normalization fused into the epilogue.
    y = jnp.dot(x_ref[...].astype(jnp.bfloat16), w_ref[...],
                preferred_element_type=jnp.float32) + b_ref[...]
    o_ref[...] = y * s_ref[...] + m_ref[...]


# ----------------------------------------------------------------------------
# Pallas wrappers
# ----------------------------------------------------------------------------
def _choose_m(M, max_tile=512):
    """Pick an M tile: full slab when small, (8,128)-aligned 512-row tiles else."""
    if M <= max_tile:
        return M, M, 1
    Mt = max_tile
    Mpad = ((M + Mt - 1) // Mt) * Mt
    return Mt, Mpad, Mpad // Mt


def token_embed(x, w, pe):
    """TokenEmbedding (Conv1d k=3, circular, no bias) + positional encoding."""
    B, T, Cin = x.shape
    D = w.shape[2]
    xp = jnp.pad(x, ((0, 0), (1, 1), (0, 0)), mode="wrap")
    return pl.pallas_call(
        _embed_kernel,
        out_shape=jax.ShapeDtypeStruct((B, T, D), jnp.float32),
        grid=(B,),
        in_specs=[
            pl.BlockSpec((1, T + 2, Cin), lambda bb: (bb, 0, 0)),
            pl.BlockSpec((3, Cin, D), lambda bb: (0, 0, 0)),
            pl.BlockSpec((T, D), lambda bb: (0, 0)),
        ],
        out_specs=pl.BlockSpec((1, T, D), lambda bb: (bb, 0, 0)),
        compiler_params=pltpu.CompilerParams(dimension_semantics=("parallel",)),
    )(xp, w, pe[:T])


def fused_inception_gelu_inception(x2d, w1, b1, w2, b2, ks):
    """conv(same, ks) -> GELU -> conv(same, ks) fused into one Pallas kernel.

    x2d: (B, H, W, Cin) f32, w1: (ks*ks, Cin, F) bf16, w2: (ks*ks, F, Cout) bf16.
    Returns (B, H*W, Cout) f32.
    """
    B, H, W, Cin = x2d.shape
    F = b1.shape[0]
    Cout = b2.shape[0]
    p = (ks - 1) // 2
    Hp, Wp = H + 2 * p, W + 2 * p
    S = Hp * Wp
    Q = (H - 1) * Wp + W
    q0 = p * Wp + p

    # zero-pad + flatten (only ~1x traffic, unlike a ks^2-inflated im2col)
    xp = jnp.pad(x2d, ((0, 0), (p, p), (p, p), (0, 0))).reshape(B, S, Cin)

    # validity mask over the wide output window (pad columns -> 0), host-built
    wp_idx = (np.arange(Q) + q0) % Wp
    mask = jnp.asarray(((wp_idx >= p) & (wp_idx < p + W))
                       .astype(np.float32).reshape(Q, 1))

    out_wide = pl.pallas_call(
        _make_fused_conv_kernel(ks, Wp, p),
        out_shape=jax.ShapeDtypeStruct((B, Q, Cout), jnp.float32),
        grid=(B,),
        in_specs=[
            pl.BlockSpec((1, S, Cin), lambda bb: (bb, 0, 0)),
            pl.BlockSpec((ks * ks, Cin, F), lambda bb: (0, 0, 0)),
            pl.BlockSpec((1, F), lambda bb: (0, 0)),
            pl.BlockSpec((ks * ks, F, Cout), lambda bb: (0, 0, 0)),
            pl.BlockSpec((1, Cout), lambda bb: (0, 0)),
            pl.BlockSpec((Q, 1), lambda bb: (0, 0)),
        ],
        out_specs=pl.BlockSpec((1, Q, Cout), lambda bb: (bb, 0, 0)),
        scratch_shapes=[pltpu.VMEM((S, F), jnp.bfloat16)],
        compiler_params=pltpu.CompilerParams(dimension_semantics=("parallel",)),
    )(xp, w1, b1.reshape(1, F), w2, b2.reshape(1, Cout), mask)

    # extract the valid H*W rows from the wide (padded-coordinate) output
    tail = S - q0 - Q
    full = jnp.pad(out_wide, ((0, 0), (q0, tail), (0, 0))).reshape(B, Hp, Wp, Cout)
    return full[:, p:p + H, p:p + W, :].reshape(B, H * W, Cout)


def wsum_residual_layernorm(x, res_list, pw_rows, g, b):
    """x, res_i: (M, N); pw_rows: (M, k) -> LayerNorm(x + sum_i pw_i * res_i)."""
    M, N = x.shape
    k = len(res_list)
    Mt, Mpad, steps = _choose_m(M)
    if Mpad != M:
        pad = Mpad - M
        x = jnp.pad(x, ((0, pad), (0, 0)))
        res_list = [jnp.pad(r, ((0, pad), (0, 0))) for r in res_list]
        pw_rows = jnp.pad(pw_rows, ((0, pad), (0, 0)))
    in_specs = [pl.BlockSpec((Mt, N), lambda i: (i, 0))]
    in_specs += [pl.BlockSpec((Mt, N), lambda i: (i, 0)) for _ in range(k)]
    in_specs += [pl.BlockSpec((Mt, k), lambda i: (i, 0)),
                 pl.BlockSpec((1, N), lambda i: (0, 0)),
                 pl.BlockSpec((1, N), lambda i: (0, 0))]
    out = pl.pallas_call(
        _make_wsum_ln_kernel(k),
        out_shape=jax.ShapeDtypeStruct((Mpad, N), jnp.float32),
        grid=(steps,),
        in_specs=in_specs,
        out_specs=pl.BlockSpec((Mt, N), lambda i: (i, 0)),
        compiler_params=pltpu.CompilerParams(dimension_semantics=("parallel",)),
    )(x, *res_list, pw_rows, g.reshape(1, N), b.reshape(1, N))
    return out[:M]


def project_denorm(x, w, b, s_rows, m_rows):
    """Final Linear projection with de-normalization fused. x: (M, D)."""
    M, D = x.shape
    C = w.shape[1]
    Mt, Mpad, steps = _choose_m(M)
    if Mpad != M:
        pad = Mpad - M
        x = jnp.pad(x, ((0, pad), (0, 0)))
        s_rows = jnp.pad(s_rows, ((0, pad), (0, 0)))
        m_rows = jnp.pad(m_rows, ((0, pad), (0, 0)))
    out = pl.pallas_call(
        _proj_denorm_kernel,
        out_shape=jax.ShapeDtypeStruct((Mpad, C), jnp.float32),
        grid=(steps,),
        in_specs=[
            pl.BlockSpec((Mt, D), lambda i: (i, 0)),
            pl.BlockSpec((D, C), lambda i: (0, 0)),
            pl.BlockSpec((1, C), lambda i: (0, 0)),
            pl.BlockSpec((Mt, C), lambda i: (i, 0)),
            pl.BlockSpec((Mt, C), lambda i: (i, 0)),
        ],
        out_specs=pl.BlockSpec((Mt, C), lambda i: (i, 0)),
        compiler_params=pltpu.CompilerParams(dimension_semantics=("parallel",)),
    )(x, w, b.reshape(1, C), s_rows, m_rows)
    return out[:M]


# ----------------------------------------------------------------------------
# Model (jitted XLA glue around the Pallas kernels)
# ----------------------------------------------------------------------------
@functools.partial(jax.jit, static_argnames=("top_k",))
def _fft_topk(x, top_k):
    xf = jnp.fft.rfft(x, axis=1)
    amp = jnp.abs(xf)                              # (B, F, N)
    freq = amp.mean(axis=(0, 2)).at[0].set(0.0)    # (F,)
    _, idx = jax.lax.top_k(freq, top_k)
    return idx, amp.mean(-1)                       # (k,), (B, F)


@functools.partial(jax.jit, static_argnames=("periods", "top_idx", "ks"))
def _times_block_body(x, amp_bt, w1, b1, w2, b2, ln_g, ln_b, *, periods, top_idx, ks):
    B, T, N = x.shape
    pw = jax.nn.softmax(amp_bt[:, list(top_idx)], axis=1)        # (B, k)
    res = []
    for period in periods:
        # Matches the reference exactly:
        #   out[:, :period, :, None].repeat(1,1,1,f).reshape(B, f, period, N)
        # (the zero-padded tail is never read because period <= T).
        length = T if T % period == 0 else (T // period + 1) * period
        f = length // period
        z2 = jnp.tile(x[:, :period, :, None], (1, 1, 1, f)).reshape(B, f, period, N)
        y = fused_inception_gelu_inception(z2, w1, b1, w2, b2, ks)  # (B, length, N)
        res.append(y[:, :T, :].reshape(B * T, N))
    pw_rows = jnp.repeat(pw, T, axis=0)                           # (B*T, k)
    out = wsum_residual_layernorm(x.reshape(B * T, N), res, pw_rows, ln_g, ln_b)
    return out.reshape(B, T, N)


def times_block(x, blk, ln_g, ln_b, top_k):
    T = x.shape[1]
    idx, amp_bt = _fft_topk(x, top_k=top_k)
    # TODO(synk): host round-trip mirrors the reference's .detach().cpu().numpy();
    # the selected periods drive the static shapes of the fused conv kernels.
    top = tuple(int(i) for i in np.asarray(jax.device_get(idx)))
    periods = tuple(T // i for i in top)
    return _times_block_body(x, amp_bt, blk["w1"], blk["b1"], blk["w2"], blk["b2"],
                             ln_g, ln_b, periods=periods, top_idx=top, ks=blk["ks"])


@jax.jit
def _prologue(x_enc, token_w, pe):
    means = jnp.mean(x_enc, axis=1, keepdims=True)
    xc = x_enc - means
    stdev = jnp.sqrt(jnp.var(xc, axis=1, keepdims=True) + 1e-5)
    xn = xc / stdev
    enc = token_embed(xn, token_w, pe)          # dropout = identity (eval)
    return enc, means[:, 0, :], stdev[:, 0, :]


@jax.jit
def _epilogue(enc, proj_w, proj_b, stdev0, means0):
    B, T, D = enc.shape
    s_rows = jnp.repeat(stdev0, T, axis=0)
    m_rows = jnp.repeat(means0, T, axis=0)
    dec = project_denorm(enc.reshape(B * T, D), proj_w, proj_b, s_rows, m_rows)
    return dec.reshape(B, T, -1)


def model_forward(x_enc, params, top_k):
    enc, means0, stdev0 = _prologue(x_enc, params["token_w"], params["pe"])
    for blk in params["blocks"]:
        enc = times_block(enc, blk, params["ln_g"], params["ln_b"], top_k)
    return _epilogue(enc, params["proj_w"], params["proj_b"], stdev0, means0)


# ----------------------------------------------------------------------------
# Deterministic parameter initialization (inception branches pre-fused)
# ----------------------------------------------------------------------------
def positional_encoding(max_len, d_model):
    pos = np.arange(max_len, dtype=np.float32)[:, None]
    div = np.exp(np.arange(0, d_model, 2, dtype=np.float32)
                 * -(np.log(10000.0) / d_model))
    pe = np.zeros((max_len, d_model), np.float32)
    pe[:, 0::2] = np.sin(pos * div)
    pe[:, 1::2] = np.cos(pos * div)
    return jnp.asarray(pe)


def _fuse_inception(w_list, b_list, ks_max):
    """mean_i conv(x; W_i, b_i) == conv(x; mean_i zero-pad(W_i), mean_i b_i)."""
    ws = []
    for w in w_list:                                  # (ksz, ksz, Cin, Cout)
        kk = w.shape[0]
        pad = (ks_max - kk) // 2
        ws.append(jnp.pad(w, ((pad, pad), (pad, pad), (0, 0), (0, 0))))
    w_eff = jnp.mean(jnp.stack(ws, 0), axis=0)        # (ks, ks, Cin, Cout)
    b_eff = jnp.mean(jnp.stack(b_list, 0), axis=0)    # (Cout,)
    ks, _, cin, cout = w_eff.shape
    return w_eff.reshape(ks * ks, cin, cout).astype(jnp.bfloat16), b_eff


def init_params(key, enc_in, d_model, d_ff, c_out, e_layers, num_kernels, max_len):
    keys = iter(jax.random.split(key, 4 + e_layers * num_kernels * 2))

    def kaiming(shape, fan_out):
        return (jnp.sqrt(2.0 / fan_out)
                * jax.random.normal(next(keys), shape)).astype(jnp.float32)

    ks_max = 2 * (num_kernels - 1) + 1
    params = {}

    token_w = kaiming((3, enc_in, d_model), fan_out=3 * d_model)
    params["token_w"] = token_w.astype(jnp.bfloat16)
    params["pe"] = positional_encoding(max_len, d_model)

    blocks = []
    for _ in range(e_layers):
        w1_list, b1_list, w2_list, b2_list = [], [], [], []
        for i in range(num_kernels):
            ksz = 2 * i + 1
            w1_list.append(kaiming((ksz, ksz, d_model, d_ff),
                                   fan_out=d_ff * ksz * ksz))
            b1_list.append(jnp.zeros((d_ff,), jnp.float32))
            w2_list.append(kaiming((ksz, ksz, d_ff, d_model),
                                   fan_out=d_model * ksz * ksz))
            b2_list.append(jnp.zeros((d_model,), jnp.float32))
        w1, b1 = _fuse_inception(w1_list, b1_list, ks_max)
        w2, b2 = _fuse_inception(w2_list, b2_list, ks_max)
        blocks.append({"ks": ks_max, "w1": w1, "b1": b1, "w2": w2, "b2": b2})
    params["blocks"] = blocks

    params["ln_g"] = jnp.ones((d_model,), jnp.float32)
    params["ln_b"] = jnp.zeros((d_model,), jnp.float32)

    lim = 1.0 / np.sqrt(d_model)
    params["proj_w"] = jax.random.uniform(next(keys), (d_model, c_out),
                                          minval=-lim, maxval=lim).astype(jnp.bfloat16)
    params["proj_b"] = jax.random.uniform(next(keys), (c_out,),
                                          minval=-lim, maxval=lim,
                                          dtype=jnp.float32)
    return params


# ----------------------------------------------------------------------------
if __name__ == "__main__":
    # small config consistent with the module
    B, T, enc_in = 2, 16, 4
    d_model, d_ff, c_out = 16, 16, 4
    e_layers, top_k, num_kernels = 2, 2, 3

    key = jax.random.PRNGKey(0)
    kx, kp = jax.random.split(key)
    x_enc = jax.random.normal(kx, (B, T, enc_in), dtype=jnp.float32)

    params = init_params(kp, enc_in, d_model, d_ff, c_out,
                         e_layers, num_kernels, max_len=T)

    out = model_forward(x_enc, params, top_k)
    out = jax.block_until_ready(out)
    assert out.shape == (B, T, c_out), out.shape
    assert bool(jnp.all(jnp.isfinite(out)))
    print("KERNEL_OK")
</pallas_src>

<mosaic_0001>
module attributes {stable_mosaic.version = 11 : i64} {
  func.func @_embed_kernel(%arg0: i32, %arg1: memref<1x18x4xf32, #tpu.memory_space<vmem>>, %arg2: memref<3x4x16xbf16, #tpu.memory_space<vmem>>, %arg3: memref<16x16xf32, #tpu.memory_space<vmem>>, %arg4: memref<1x16x16xf32, #tpu.memory_space<vmem>>) attributes {dimension_semantics = [#tpu.dimension_semantics<parallel>], iteration_bounds = array<i64: 2>, scalar_prefetch = 0 : i64, scratch_operands = 0 : i64, tpu.core_type = #tpu.core_type<tc>, window_params = [{transform_indices = @transform_0, window_bounds = array<i64: 1, 18, 4>}, {pipeline_mode = #tpu.pipeline_mode<synchronous>, transform_indices = @transform_1, window_bounds = array<i64: 3, 4, 16>}, {pipeline_mode = #tpu.pipeline_mode<synchronous>, transform_indices = @transform_2, window_bounds = array<i64: 16, 16>}, {transform_indices = @transform_3, window_bounds = array<i64: 1, 16, 16>}]} {
    %c0 = arith.constant 0 : index
    %c0_0 = arith.constant 0 : index
    %0 = vector.load %arg3[%c0, %c0_0] : memref<16x16xf32, #tpu.memory_space<vmem>>, vector<16x16xf32>
    %c0_1 = arith.constant 0 : index
    %c0_2 = arith.constant 0 : index
    %c0_3 = arith.constant 0 : index
    %1 = vector.load %arg1[%c0_1, %c0_2, %c0_3] : memref<1x18x4xf32, #tpu.memory_space<vmem>>, vector<1x16x4xf32>
    %2 = vector.shape_cast %1 : vector<1x16x4xf32> to vector<16x4xf32>
    %3 = arith.truncf %2 : vector<16x4xf32> to vector<16x4xbf16>
    %c0_4 = arith.constant 0 : index
    %c0_5 = arith.constant 0 : index
    %c0_6 = arith.constant 0 : index
    %4 = vector.load %arg2[%c0_4, %c0_5, %c0_6] : memref<3x4x16xbf16, #tpu.memory_space<vmem>>, vector<1x4x16xbf16>
    %5 = vector.shape_cast %4 : vector<1x4x16xbf16> to vector<4x16xbf16>
    %cst = arith.constant dense<0.000000e+00> : vector<16x16xf32>
    %6 = tpu.matmul %3, %5, %cst {dimension_numbers = #tpu.dot_dimension_numbers<[1], [0], [0], [1], [0, 0, 1, 1], [], []>} : vector<16x4xbf16>, vector<4x16xbf16>, vector<16x16xf32> -> vector<16x16xf32>
    %7 = arith.addf %0, %6 : vector<16x16xf32>
    %c0_7 = arith.constant 0 : index
    %c1 = arith.constant 1 : index
    %c0_8 = arith.constant 0 : index
    %8 = vector.load %arg1[%c0_7, %c1, %c0_8] : memref<1x18x4xf32, #tpu.memory_space<vmem>>, vector<1x16x4xf32>
    %9 = vector.shape_cast %8 : vector<1x16x4xf32> to vector<16x4xf32>
    %10 = arith.truncf %9 : vector<16x4xf32> to vector<16x4xbf16>
    %c1_9 = arith.constant 1 : index
    %c0_10 = arith.constant 0 : index
    %c0_11 = arith.constant 0 : index
    %11 = vector.load %arg2[%c1_9, %c0_10, %c0_11] : memref<3x4x16xbf16, #tpu.memory_space<vmem>>, vector<1x4x16xbf16>
    %12 = vector.shape_cast %11 : vector<1x4x16xbf16> to vector<4x16xbf16>
    %cst_12 = arith.constant dense<0.000000e+00> : vector<16x16xf32>
    %13 = tpu.matmul %10, %12, %cst_12 {dimension_numbers = #tpu.dot_dimension_numbers<[1], [0], [0], [1], [0, 0, 1, 1], [], []>} : vector<16x4xbf16>, vector<4x16xbf16>, vector<16x16xf32> -> vector<16x16xf32>
    %14 = arith.addf %7, %13 : vector<16x16xf32>
    %c0_13 = arith.constant 0 : index
    %c2 = arith.constant 2 : index
    %c0_14 = arith.constant 0 : index
    %15 = vector.load %arg1[%c0_13, %c2, %c0_14] : memref<1x18x4xf32, #tpu.memory_space<vmem>>, vector<1x16x4xf32>
    %16 = vector.shape_cast %15 : vector<1x16x4xf32> to vector<16x4xf32>
    %17 = arith.truncf %16 : vector<16x4xf32> to vector<16x4xbf16>
    %c2_15 = arith.constant 2 : index
    %c0_16 = arith.constant 0 : index
    %c0_17 = arith.constant 0 : index
    %18 = vector.load %arg2[%c2_15, %c0_16, %c0_17] : memref<3x4x16xbf16, #tpu.memory_space<vmem>>, vector<1x4x16xbf16>
    %19 = vector.shape_cast %18 : vector<1x4x16xbf16> to vector<4x16xbf16>
    %cst_18 = arith.constant dense<0.000000e+00> : vector<16x16xf32>
    %20 = tpu.matmul %17, %19, %cst_18 {dimension_numbers = #tpu.dot_dimension_numbers<[1], [0], [0], [1], [0, 0, 1, 1], [], []>} : vector<16x4xbf16>, vector<4x16xbf16>, vector<16x16xf32> -> vector<16x16xf32>
    %21 = arith.addf %14, %20 : vector<16x16xf32>
    %c0_19 = arith.constant 0 : index
    %c0_20 = arith.constant 0 : index
    %c0_21 = arith.constant 0 : index
    %22 = vector.load %arg4[%c0_19, %c0_20, %c0_21] : memref<1x16x16xf32, #tpu.memory_space<vmem>>, vector<1x16x16xf32>
    %23 = vector.shape_cast %22 : vector<1x16x16xf32> to vector<16x16xf32>
    %24 = vector.shape_cast %21 : vector<16x16xf32> to vector<1x16x16xf32>
    tpu.vector_store %arg4[%c0_19, %c0_20, %c0_21], %24 {strides = array<i32>} : memref<1x16x16xf32, #tpu.memory_space<vmem>>, vector<1x16x16xf32>,
    return
  }
  func.func @transform_0(%arg0: i32) -> (i32, i32, i32) {
    %c0_i32 = arith.constant 0 : i32
    %c0_i32_0 = arith.constant 0 : i32
    %c0_i32_1 = arith.constant 0 : i32
    return %arg0, %c0_i32, %c0_i32_0 : i32, i32, i32
  }
  func.func @transform_1(%arg0: i32) -> (i32, i32, i32) {
    %c0_i32 = arith.constant 0 : i32
    %c0_i32_0 = arith.constant 0 : i32
    %c0_i32_1 = arith.constant 0 : i32
    %c0_i32_2 = arith.constant 0 : i32
    return %c0_i32, %c0_i32_0, %c0_i32_1 : i32, i32, i32
  }
  func.func @transform_2(%arg0: i32) -> (i32, i32) {
    %c0_i32 = arith.constant 0 : i32
    %c0_i32_0 = arith.constant 0 : i32
    %c0_i32_1 = arith.constant 0 : i32
    return %c0_i32, %c0_i32_0 : i32, i32
  }
  func.func @transform_3(%arg0: i32) -> (i32, i32, i32) {
    %c0_i32 = arith.constant 0 : i32
    %c0_i32_0 = arith.constant 0 : i32
    %c0_i32_1 = arith.constant 0 : i32
    return %arg0, %c0_i32, %c0_i32_0 : i32, i32, i32
  }
}

</mosaic_0001>

<llo_original>
// kernel: _prologue.1
$region0: #{_prologue.1}
  #allocation0 [shape = 'u32[]', space=smem, size = 0x4, offset = 0x4, fixed_abs, tag = 'smem constant byte address 0x4 - core index']
  #allocation1 [shape = 'u32[72,128]{1,0:T(1,128)}', space=vmem, size = 0x9000, scoped, tag = 'internal scratch']
  %s0 = inlined_call_operand.vmem [shape: f32[2,18,4], index: 0, kind: input, shape index: {}]
  %s1 = inlined_call_operand.vmem [shape: bf16[3,4,16], index: 1, kind: input, shape index: {}]
  %s2 = inlined_call_operand.vmem [shape: f32[16,16], index: 2, kind: input, shape index: {}]
  %s3 = inlined_call_operand.hbm [shape: f32[2,16,16], index: 3, kind: output, shape index: {}]
  %s4 = sld [smem:[#allocation0]]
  $region45: #{_prologue.1} parent=0
    _
  %s6 = ssub.s32 1, %s4
  %s7 = scalar_select 0, %s6, %s4
  $region1: #{_prologue.1} parent=0
    #allocation2 [shape = 'u8[16384]{0}', space=vmem, size = 0x4000, scoped, tag = 'output window, operand 0']
    #allocation3 [shape = 's32[2]{0}', space=sflag, size = 0x8, scoped, tag = 'scoped memory for _prologue.1']
    %8 = vsyncpa [#allocation3], 0
    %s9 = scalar_lea.sflag [#allocation3], 1
    %10 = vsyncpa %s9, 0
    loop: start=0, step=1, limit=4
    $region2: #{_prologue.1} parent=1 // loop_pre_header
      _
    $region3: #{_prologue.1} parent=1 // loop_header
      %s12 = sphi 0, %s16
      %p13 = scmp.ge.s32.totalorder %s12, 4
      %s22 = sphi 0, %s24
      %s25 = sphi 0, %s22
      %s26 = sphi 0, %s25
      %s42 = sphi 0, %s26
      %s46 = sphi 0, %s46
      %s48 = sphi 0, %s46
      %s49 = sphi 0, %s48
      %s63 = sphi 0, %s49
      %s67 = sphi 0, %s67
      %s69 = sphi 0, %s67
      %s70 = sphi 0, %s69
      %s84 = sphi 0, %s70
      %s90 = sphi 0, %s92
      %s93 = sphi 0, %s90
      %s94 = sphi 0, %s93
      %s110 = sphi 0, %s94
    $region4: #{_prologue.1} parent=1 // loop_header_branch
      %15 = sbr.rel (%p13) target = $region8
    $region5: #{_prologue.1} parent=1 // loop_body
      %s17 = ssub.s32 %s12, 1
      %s18 = ssub.s32 %s12, 2
      %s19 = sadd.s32 %s12, 1
      %s20 = ssub.s32 %s12, %s19
      %p21 = scmp.eq.s32.totalorder %s20, 0
      %s23 = sadd.s32 %s22, 1
      %s24 = scalar_select %p21, %s22, %s23
      %p27 = pneg %p21
      %p28 = scmp.eq.s32.totalorder %s12, 1
      %p29 = por %p27, %p28
      %p30 = scmp.ne.s32.totalorder %s22, %s25
      %p31 = scmp.eq.s32.totalorder %s12, 0
      %p32 = por %p30, %p31
      %p33 = scmp.ne.s32.totalorder %s22, %s25
      %p34 = scmp.eq.s32.totalorder %s17, 1
      %p35 = por %p33, %p34
      %p36 = scmp.ne.s32.totalorder %s25, %s26
      %p37 = scmp.eq.s32.totalorder %s17, 0
      %p38 = por %p36, %p37
      %p39 = scmp.ne.s32.totalorder %s25, %s26
      %p40 = scmp.eq.s32.totalorder %s18, 1
      %p41 = por %p39, %p40
      %p43 = scmp.ne.s32.totalorder %s26, %s42
      %p44 = scmp.eq.s32.totalorder %s18, 0
      %p45 = por %p43, %p44
      %s47 = sadd.s32 %s46, 1
      %p50 = scmp.eq.s32.totalorder %s12, 1
      %p51 = scmp.ne.s32.totalorder %s46, %s48
      %p52 = scmp.eq.s32.totalorder %s12, 0
      %p53 = por %p51, %p52
      %p54 = scmp.ne.s32.totalorder %s46, %s48
      %p55 = scmp.eq.s32.totalorder %s17, 1
      %p56 = por %p54, %p55
      %p57 = scmp.ne.s32.totalorder %s48, %s49
      %p58 = scmp.eq.s32.totalorder %s17, 0
      %p59 = por %p57, %p58
      %p60 = scmp.ne.s32.totalorder %s48, %s49
      %p61 = scmp.eq.s32.totalorder %s18, 1
      %p62 = por %p60, %p61
      %p64 = scmp.ne.s32.totalorder %s49, %s63
      %p65 = scmp.eq.s32.totalorder %s18, 0
      %p66 = por %p64, %p65
      %s68 = sadd.s32 %s67, 1
      %p71 = scmp.eq.s32.totalorder %s12, 1
      %p72 = scmp.ne.s32.totalorder %s67, %s69
      %p73 = scmp.eq.s32.totalorder %s12, 0
      %p74 = por %p72, %p73
      %p75 = scmp.ne.s32.totalorder %s67, %s69
      %p76 = scmp.eq.s32.totalorder %s17, 1
      %p77 = por %p75, %p76
      %p78 = scmp.ne.s32.totalorder %s69, %s70
      %p79 = scmp.eq.s32.totalorder %s17, 0
      %p80 = por %p78, %p79
      %p81 = scmp.ne.s32.totalorder %s69, %s70
      %p82 = scmp.eq.s32.totalorder %s18, 1
      %p83 = por %p81, %p82
      %p85 = scmp.ne.s32.totalorder %s70, %s84
      %p86 = scmp.eq.s32.totalorder %s18, 0
      %p87 = por %p85, %p86
      %s88 = ssub.s32 %s12, %s19
      %p89 = scmp.eq.s32.totalorder %s88, 0
      %s91 = sadd.s32 %s90, 1
      %s92 = scalar_select %p89, %s90, %s91
      %p95 = pneg %p89
      %p96 = scmp.eq.s32.totalorder %s12, 1
      %p97 = por %p95, %p96
      %p98 = scmp.ne.s32.totalorder %s90, %s93
      %p99 = scmp.eq.s32.totalorder %s12, 0
      %p100 = por %p98, %p99
      %p101 = scmp.ne.s32.totalorder %s90, %s93
      %p102 = scmp.eq.s32.totalorder %s17, 1
      %p103 = por %p101, %p102
      %p104 = scmp.ne.s32.totalorder %s93, %s94
      %p105 = scmp.eq.s32.totalorder %s17, 0
      %p106 = por %p104, %p105
      %p107 = scmp.ne.s32.totalorder %s93, %s94
      %p108 = scmp.eq.s32.totalorder %s18, 1
      %p109 = por %p107, %p108
      %p111 = scmp.ne.s32.totalorder %s94, %s110
      %p112 = scmp.eq.s32.totalorder %s18, 0
      %p113 = por %p111, %p112
      %p114 = scmp.le.s32.totalorder 1, %s12
      %p115 = scmp.lt.s32.totalorder %s12, 3
      %p116 = pnand %p114, %p115
      %p117 = pneg %p116
      // Predicated region
      $region9: #{_prologue.1} parent=5 // pred_check
        _
      $region10: #{_prologue.1} parent=5 // pred_check_branch
        %119 = sbr.rel (%p116) target = $region12
      $region11: #{_prologue.1} parent=5 // pred_region
        %s120 = ssub.s32 %s12, 1
        // Predicated region
        $region13: #{_prologue.1} parent=11 // pred_check
          %p121 = pneg %p59
        $region14: #{_prologue.1} parent=11 // pred_check_branch
          %123 = sbr.rel (%p121) target = $region16
        $region15: #{_prologue.1} parent=11 // pred_region
          _
        $region16: #{_prologue.1} parent=11 // pred_fallthru
          _
        // Predicated region
        $region17: #{_prologue.1} parent=11 // pred_check
          %p124 = pneg %p80
        $region18: #{_prologue.1} parent=11 // pred_check_branch
          %126 = sbr.rel (%p124) target = $region20
        $region19: #{_prologue.1} parent=11 // pred_region
          _
        $region20: #{_prologue.1} parent=11 // pred_fallthru
          _
      $region12: #{_prologue.1} parent=5 // pred_fallthru
        _
      %p127 = scmp.lt.s32.totalorder %s12, 2
      // Predicated region
      $region21: #{_prologue.1} parent=5 // pred_check
        %p128 = pneg %p127
      $region22: #{_prologue.1} parent=5 // pred_check_branch
        %130 = sbr.rel (%p128) target = $region24
      $region23: #{_prologue.1} parent=5 // pred_region
        // Predicated region
        $region25: #{_prologue.1} parent=23 // pred_check
          %p131 = pneg %p32
        $region26: #{_prologue.1} parent=23 // pred_check_branch
          %133 = sbr.rel (%p131) target = $region28
        $region27: #{_prologue.1} parent=23 // pred_region
          %p134 = scmp.lt.s32.totalorder %s12, 1
          %s135 = scalar_select %p134, %s12, 1
          %s136 = smul.addr %s135, 3
          %s137 = smul.addr %s136, 8
          %s138 = scalar_lea.vmem %s0, %s137
        $region28: #{_prologue.1} parent=23 // pred_fallthru
          _
      $region24: #{_prologue.1} parent=5 // pred_fallthru
        _
      %p139 = scmp.le.s32.totalorder 1, %s12
      %p140 = scmp.lt.s32.totalorder %s12, 3
      %p141 = pnand %p139, %p140
      %p142 = pneg %p141
      // Predicated region
      $region29: #{_prologue.1} parent=5 // pred_check
        _
      $region30: #{_prologue.1} parent=5 // pred_check_branch
        %144 = sbr.rel (%p141) target = $region32
      $region31: #{_prologue.1} parent=5 // pred_region
        %s145 = ssub.s32 %s12, 1
        %p146 = scmp.lt.s32.totalorder %s17, 1
        %s147 = scalar_select %p146, %s17, 1
        %s148 = smul.addr %s147, 3
        %s149 = smul.addr %s148, 8
        %s150 = scalar_lea.vmem %s0, %s149
        %p151 = pneg %p38
        %p152 = pneg %p35
        %p153 = pneg %p59
        %p154 = pneg %p56
        %p155 = pneg %p80
        %p156 = pneg %p77
        %p157 = pneg %p106
        %p158 = pneg %p103
        %s159 = sand.u32 %s93, 1
        %s160 = scalar_lea.sflag [#allocation3], %s159
        %s161 = sand.u32 %s93, 1
        %s162 = smul.addr %s161, 16
        %s163 = scalar_lea.vmem [#allocation2], %s162
        %p164 = scmp.lt.s32.totalorder %s17, 1
        %s165 = scalar_select %p164, %s17, 1
        %s166 = smul.addr %s165, 3
        %s167 = smul.addr %s166, 8
        %s168 = scalar_lea.vmem %s0, %s167
        %v170 = vld [vmem:[%s2] sm:$0xff]
        %v171 = vld [vmem:[%s2 + $0x8] sm:$0xff]
        %v172 = vld [vmem:[%s168] sm:$0xff]
        %v173 = vld [vmem:[%s168 + $0x8] sm:$0xff]
        %v174 = vpack.c.bf16 %v173, %v172
        %v175 = vld [vmem:[%s1] sm:$0x3]
        %vm176 = vcmask 31744
        %v178 = vsel %vm176, %v174, 0
        %vm180 = vcmask 1041408
        %v182 = vsel %vm180, %v175, 0
        %184 = vmatpush.bf16.msra.mxu0 0
        %185 = vmatpush.bf16.msra.mxu0 0
        %186 = vmatpush.bf16.msra.mxu0 0
        %187 = vmatpush.bf16.msra.mxu0 0
        %188 = vmatpush.bf16.msra.mxu0 0
        %189 = vmatpush.bf16.msra.mxu0 0
        %190 = vmatpush.bf16.msra.mxu0 0
        %191 = vmatpush.bf16.msra.mxu0 %v182
        %192 = vmatmul.bf16.gmra.mxu0 %v178
        %v193 = vpop.f32.mrf.mxu0
        %v194 = vadd.f32 0.0, %v193
        %v195 = vpop.f32.mrf.mxu0
        %v196 = vadd.f32 0.0, %v195
        %197 = vdwg.mxu0
        %v198 = vadd.f32 %v170, %v194
        %v199 = vadd.f32 %v171, %v196
        %v200 = vld [vmem:[%s168 + $0x1] sm:$0xff]
        %v201 = vld [vmem:[%s168 + $0x9] sm:$0xff]
        %v202 = vpack.c.bf16 %v201, %v200
        %s203 = scalar_lea.vmem %s1, 2
        %v204 = vld [vmem:[%s203] sm:$0x3]
        %v206 = vsel %vm176, %v202, 0
        %v209 = vsel %vm180, %v204, 0
        %211 = vmatpush.bf16.msra.mxu0 0
        %212 = vmatpush.bf16.msra.mxu0 0
        %213 = vmatpush.bf16.msra.mxu0 0
        %214 = vmatpush.bf16.msra.mxu0 0
        %215 = vmatpush.bf16.msra.mxu0 0
        %216 = vmatpush.bf16.msra.mxu0 0
        %217 = vmatpush.bf16.msra.mxu0 0
        %218 = vmatpush.bf16.msra.mxu0 %v209
        %219 = vmatmul.bf16.gmra.mxu0 %v206
        %v220 = vpop.f32.mrf.mxu0
        %v221 = vadd.f32 0.0, %v220
        %v222 = vpop.f32.mrf.mxu0
        %v223 = vadd.f32 0.0, %v222
        %224 = vdwg.mxu0
        %v225 = vadd.f32 %v198, %v221
        %v226 = vadd.f32 %v199, %v223
        %v227 = vld [vmem:[%s168 + $0x2] sm:$0xff]
        %v228 = vld [vmem:[%s168 + $0xa] sm:$0xff]
        %v229 = vpack.c.bf16 %v228, %v227
        %s230 = scalar_lea.vmem %s1, 4
        %v231 = vld [vmem:[%s230] sm:$0x3]
        %v233 = vsel %vm176, %v229, 0
        %v236 = vsel %vm180, %v231, 0
        %238 = vmatpush.bf16.msra.mxu0 0
        %239 = vmatpush.bf16.msra.mxu0 0
        %240 = vmatpush.bf16.msra.mxu0 0
        %241 = vmatpush.bf16.msra.mxu0 0
        %242 = vmatpush.bf16.msra.mxu0 0
        %243 = vmatpush.bf16.msra.mxu0 0
        %244 = vmatpush.bf16.msra.mxu0 0
        %245 = vmatpush.bf16.msra.mxu0 %v236
        %246 = vmatmul.bf16.gmra.mxu0 %v233
        %v247 = vpop.f32.mrf.mxu0
        %v248 = vadd.f32 0.0, %v247
        %v249 = vpop.f32.mrf.mxu0
        %v250 = vadd.f32 0.0, %v249
        %251 = vdwg.mxu0
        %v252 = vadd.f32 %v225, %v248
        %v253 = vadd.f32 %v226, %v250
        %vm254 = vcmask 130048
        %255 = vst.msk [vmem:[%s163] sm:$0xff] %vm254, %v252
        %256 = vst.msk [vmem:[%s163 + $0x8] sm:$0xff] %vm254, %v253
        %s257 = sand.u32 %s93, 1
        %s258 = scalar_lea.sflag [#allocation3], %s257
        %s259 = sand.u32 %s93, 1
        %s260 = smul.addr %s259, 16
        %s261 = scalar_lea.vmem [#allocation2], %s260
        // Predicated region
        $region33: #{_prologue.1} parent=31 // pred_check
          %p262 = pneg %p103
        $region34: #{_prologue.1} parent=31 // pred_check_branch
          %264 = sbr.rel (%p262) target = $region36
        $region35: #{_prologue.1} parent=31 // pred_region
          %266 = vsyncadd %s258, 0
          %s267 = smul.addr %s17, 2
          %s268 = smul.addr %s267, 8
          %s269 = scalar_lea.hbm %s3, %s268
          %s270 = sshll.u32 %s261, 4
          %s271 = int_to_ptr.vmem [resolvable:$true] %s270
          %s272 = sshll.u32 %s269, 4
          %s273 = int_to_ptr.hbm [resolvable:$true] %s272
          %278 = dma.vmem_to_hbm [thread:$0]  %s271, 256, %s273, %s258, 128, 128, 8
        $region36: #{_prologue.1} parent=31 // pred_fallthru
          _
      $region32: #{_prologue.1} parent=5 // pred_fallthru
        _
      %p279 = scmp.le.s32.totalorder 2, %s12
      // Predicated region
      $region37: #{_prologue.1} parent=5 // pred_check
        %p280 = pneg %p279
      $region38: #{_prologue.1} parent=5 // pred_check_branch
        %282 = sbr.rel (%p280) target = $region40
      $region39: #{_prologue.1} parent=5 // pred_region
        %s283 = ssub.s32 %s12, 2
        // Predicated region
        $region41: #{_prologue.1} parent=39 // pred_check
          %p284 = pneg %p109
        $region42: #{_prologue.1} parent=39 // pred_check_branch
          %286 = sbr.rel (%p284) target = $region44
        $region43: #{_prologue.1} parent=39 // pred_region
          %s287 = sand.u32 %s94, 1
          %s288 = scalar_lea.sflag [#allocation3], %s287
          %s289 = sand.u32 %s94, 1
          %s290 = smul.addr %s289, 16
          %s291 = scalar_lea.vmem [#allocation2], %s290
          %293 = dma.done %s288, 256
        $region44: #{_prologue.1} parent=39 // pred_fallthru
          _
      $region40: #{_prologue.1} parent=5 // pred_fallthru
        _
    $region6: #{_prologue.1} parent=1 // loop_footer
      %s16 = sadd.s32 1, %s12
    $region7: #{_prologue.1} parent=1 // loop_footer_branch
      %11 = sbr.rel target = $region3
    $region8: #{_prologue.1} parent=1 // loop_exit
      _
    %294 = vsyncpa [#allocation3], 1
    %s295 = scalar_lea.sflag [#allocation3], 1
    %296 = vsyncpa %s295, 1

</llo_original>
